<compile_context>
chip_gen: v7x
topology: tpu7x:2x2x1
jax: 0.10.0
libtpu: 0.0.40
codegen_flags: <defaults>
</compile_context>

<pallas_src>
import jax
import jax.numpy as jnp
from jax.experimental import pallas as pl
from jax.experimental.pallas import tpu as pltpu

BN_EPS = 1e-5
LRELU_SLOPE = 0.2
LANE = 128
SUBLANE = 8


def _round_up(x, m):
    return (x + m - 1) // m * m


# ----------------------------------------------------------------------------
# Fused MLP kernel: whole network in one invocation (no grid).
#   x_ref          : (Bpad, Kpad0)  f32
#   w{i}_ref       : (Kpad_i, Npad_i) bf16  -- folded (Linear + eval-BN) weight
#   b{i}_ref       : (1, Npad_i)    f32    -- folded bias
#   o_ref          : (Bpad, Npad_head) f32
# All padding is exact zeros, so padded K rows / N cols contribute nothing.
# ----------------------------------------------------------------------------
def _fused_mlp_kernel(x_ref,
                      w0_ref, b0_ref, w1_ref, b1_ref, w2_ref, b2_ref,
                      w3_ref, b3_ref, w4_ref, b4_ref,
                      o_ref):
    h = x_ref[...]
    layers = (
        (w0_ref, b0_ref, True),
        (w1_ref, b1_ref, True),
        (w2_ref, b2_ref, True),
        (w3_ref, b3_ref, True),
        (w4_ref, b4_ref, False),   # head: Linear only, no activation
    )
    for w_ref, b_ref, has_act in layers:
        y = jnp.dot(h.astype(w_ref.dtype), w_ref[...],
                    preferred_element_type=jnp.float32) + b_ref[...]
        h = jnp.where(y >= 0.0, y, LRELU_SLOPE * y) if has_act else y
    o_ref[...] = h


def fused_mlp(x_pad, weights, biases):
    """x_pad: (Bpad, Kpad0) f32; weights: list of (Kpad_i, Npad_i) bf16;
    biases: list of (1, Npad_i) f32."""
    bpad = x_pad.shape[0]
    n_out = weights[-1].shape[1]
    max_n = max(w.shape[1] for w in weights)

    # Explicit VMEM budget: packed weights + biases + I/O + activation headroom.
    w_bytes = sum(int(w.size) * w.dtype.itemsize for w in weights)
    b_bytes = sum(int(b.size) * b.dtype.itemsize for b in biases)
    io_bytes = int(x_pad.size) * 4 + bpad * n_out * 4
    act_bytes = 4 * bpad * max_n * 4            # a few live (Bpad, Npad) f32 temporaries
    vmem_limit = w_bytes + b_bytes + io_bytes + act_bytes + (16 << 20)
    vmem_limit = int(max(vmem_limit, 32 << 20))  # fine on v5e/v6e (128 MiB) & v7x (64 MiB)

    vmem = pltpu.MemorySpace.VMEM
    args = [x_pad]
    for w, b in zip(weights, biases):
        args += [w, b]

    return pl.pallas_call(
        _fused_mlp_kernel,
        out_shape=jax.ShapeDtypeStruct((bpad, n_out), jnp.float32),
        in_specs=[pl.BlockSpec(memory_space=vmem) for _ in args],
        out_specs=pl.BlockSpec(memory_space=vmem),
        compiler_params=pltpu.CompilerParams(vmem_limit_bytes=vmem_limit),
    )(*args)


# ----------------------------------------------------------------------------
# Parameter construction (deterministic, synthetic) + offline folding / packing
# ----------------------------------------------------------------------------
def _layer_dims(input_size, hidden_size, output_size):
    return [
        (input_size, hidden_size),        # fc1
        (hidden_size, hidden_size),       # fc2
        (hidden_size, hidden_size),       # fc3
        (hidden_size, hidden_size // 2),  # fc4
        (hidden_size // 2, output_size),  # output head
    ]


def make_params(key, input_size, hidden_size, output_size):
    params = {}
    for i, (din, dout) in enumerate(_layer_dims(input_size, hidden_size, output_size)):
        key, kw, kb = jax.random.split(key, 3)
        scale = 1.0 / jnp.sqrt(jnp.float32(din))
        params[f"w{i}"] = jax.random.uniform(kw, (din, dout), jnp.float32, -scale, scale)
        params[f"b{i}"] = jax.random.uniform(kb, (dout,), jnp.float32, -scale, scale)
    bn_dims = [hidden_size, hidden_size, hidden_size, hidden_size // 2]
    for i, d in enumerate(bn_dims):
        key, kg, kb, km, kv = jax.random.split(key, 5)
        params[f"bn{i}_gamma"] = 1.0 + 0.1 * jax.random.normal(kg, (d,), jnp.float32)
        params[f"bn{i}_beta"] = 0.1 * jax.random.normal(kb, (d,), jnp.float32)
        params[f"bn{i}_mean"] = 0.1 * jax.random.normal(km, (d,), jnp.float32)
        params[f"bn{i}_var"] = jnp.abs(1.0 + 0.1 * jax.random.normal(kv, (d,), jnp.float32))
    return params


def fold_and_pack(params, input_size, hidden_size, output_size,
                  weight_dtype=jnp.bfloat16):
    """Fold eval-mode BN + bias into (W, b); zero-pad each layer to its OWN
    lane-dense (Kpad_i, Npad_i) 128-multiples (no square padding)."""
    dims = _layer_dims(input_size, hidden_size, output_size)
    weights, biases = [], []
    for i, (din, dout) in enumerate(dims):
        w = params[f"w{i}"]
        b = params[f"b{i}"]
        if i < 4:  # hidden layers have BN; the head does not
            scale = params[f"bn{i}_gamma"] * jax.lax.rsqrt(params[f"bn{i}_var"] + BN_EPS)
            w = w * scale[None, :]
            b = (b - params[f"bn{i}_mean"]) * scale + params[f"bn{i}_beta"]
        kpad = _round_up(din, LANE)
        npad = _round_up(dout, LANE)
        wp = jnp.zeros((kpad, npad), jnp.float32).at[:din, :dout].set(w)
        bp = jnp.zeros((1, npad), jnp.float32).at[0, :dout].set(b)
        weights.append(wp.astype(weight_dtype))
        biases.append(bp)
    return weights, biases


# ----------------------------------------------------------------------------
# Forward pass (dict glue in JAX, entire MLP in one Pallas kernel)
# ----------------------------------------------------------------------------
def emoca_recognition_forward(fused_params, emoca_feature, input_size, output_size):
    weights, biases = fused_params
    # Mirror the module: stack each key's list of per-frame features along dim=1,
    # then concat along dim=1.
    feats = [
        jnp.stack([jnp.asarray(f, jnp.float32) for f in emoca_feature[k]], axis=1)
        for k in emoca_feature
    ]
    x = jnp.concatenate(feats, axis=1).astype(jnp.float32)
    assert x.shape[1] == input_size, (x.shape, input_size)
    B = x.shape[0]
    kpad0 = weights[0].shape[0]
    bpad = _round_up(max(B, SUBLANE), SUBLANE)
    x_pad = jnp.zeros((bpad, kpad0), jnp.float32).at[:B, :input_size].set(x)
    out_pad = fused_mlp(x_pad, weights, biases)
    return out_pad[:B, :output_size]


# ----------------------------------------------------------------------------
# References (plain JAX) for sanity checking
# ----------------------------------------------------------------------------
def reference_forward_f32(params, x):
    def bn(y, i):
        return ((y - params[f"bn{i}_mean"]) / jnp.sqrt(params[f"bn{i}_var"] + BN_EPS)
                * params[f"bn{i}_gamma"] + params[f"bn{i}_beta"])

    def lrelu(y):
        return jnp.where(y >= 0, y, LRELU_SLOPE * y)

    for i in range(4):
        x = lrelu(bn(x @ params[f"w{i}"] + params[f"b{i}"], i))
    return x @ params["w4"] + params["b4"]


def reference_forward_matched(params, x, input_size, hidden_size, output_size):
    """Reference that mimics the kernel numerics (folded BN, bf16 matmul operands).
    Note: activations are re-cast to bf16 before every matmul (intentional; matches
    the kernel), so error vs the fp32 reference compounds across the 5 layers."""
    def lrelu(y):
        return jnp.where(y >= 0, y, LRELU_SLOPE * y)

    for i, _ in enumerate(_layer_dims(input_size, hidden_size, output_size)):
        w = params[f"w{i}"]
        b = params[f"b{i}"]
        if i < 4:
            scale = params[f"bn{i}_gamma"] * jax.lax.rsqrt(params[f"bn{i}_var"] + BN_EPS)
            w = w * scale[None, :]
            b = (b - params[f"bn{i}_mean"]) * scale + params[f"bn{i}_beta"]
        y = jnp.dot(x.astype(jnp.bfloat16), w.astype(jnp.bfloat16),
                    preferred_element_type=jnp.float32) + b
        x = lrelu(y) if i < 4 else y
    return x


if __name__ == "__main__":
    # Small shapes consistent with the module's structure
    # (module defaults: input=156, hidden=2048, output=7 — shrunk for the test).
    B = 8
    INPUT_SIZE = 32
    HIDDEN = 128
    OUTPUT = 7

    key = jax.random.PRNGKey(0)
    key, kp, kf1, kf2 = jax.random.split(key, 4)
    params = make_params(kp, INPUT_SIZE, HIDDEN, OUTPUT)
    fused = fold_and_pack(params, INPUT_SIZE, HIDDEN, OUTPUT)

    # Synthetic emoca_feature dict: two keys, each a list of (B,) per-frame scalars,
    # totaling INPUT_SIZE features after stack+concat.
    n_exp, n_pose = 20, 12
    exp_feats = list(jax.random.normal(kf1, (n_exp, B), jnp.float32))
    pose_feats = list(jax.random.normal(kf2, (n_pose, B), jnp.float32))
    emoca_feature = {"expcode": exp_feats, "posecode": pose_feats}

    out = emoca_recognition_forward(fused, emoca_feature, INPUT_SIZE, OUTPUT)
    out = jax.block_until_ready(out)
    assert out.shape == (B, OUTPUT), out.shape

    x_flat = jnp.concatenate(
        [jnp.stack(exp_feats, axis=1), jnp.stack(pose_feats, axis=1)], axis=1
    )

    # 1) Kernel mechanics check vs a numerics-matched (folded BN, bf16 operand) ref.
    ref_m = reference_forward_matched(params, x_flat, INPUT_SIZE, HIDDEN, OUTPUT)
    err_m = float(jnp.max(jnp.abs(out - ref_m)))
    assert jnp.allclose(out, ref_m, atol=2e-3, rtol=2e-3), err_m

    # 2) Module-semantics check vs the exact fp32 reference (loosened for bf16 weights).
    ref_f = reference_forward_f32(params, x_flat)
    err_f = float(jnp.max(jnp.abs(out - ref_f)))
    assert jnp.allclose(out, ref_f, atol=5e-2, rtol=5e-2), err_f

    print("KERNEL_OK")
</pallas_src>

<mosaic_0001>
module attributes {stable_mosaic.version = 11 : i64} {
  func.func @_fused_mlp_kernel(%arg0: memref<8x128xf32, #tpu.memory_space<vmem>>, %arg1: memref<128x128xbf16, #tpu.memory_space<vmem>>, %arg2: memref<1x128xf32, #tpu.memory_space<vmem>>, %arg3: memref<128x128xbf16, #tpu.memory_space<vmem>>, %arg4: memref<1x128xf32, #tpu.memory_space<vmem>>, %arg5: memref<128x128xbf16, #tpu.memory_space<vmem>>, %arg6: memref<1x128xf32, #tpu.memory_space<vmem>>, %arg7: memref<128x128xbf16, #tpu.memory_space<vmem>>, %arg8: memref<1x128xf32, #tpu.memory_space<vmem>>, %arg9: memref<128x128xbf16, #tpu.memory_space<vmem>>, %arg10: memref<1x128xf32, #tpu.memory_space<vmem>>, %arg11: memref<8x128xf32, #tpu.memory_space<vmem>>) attributes {dimension_semantics = [], scalar_prefetch = 0 : i64, scratch_operands = 0 : i64, tpu.core_type = #tpu.core_type<tc>} {
    %c0 = arith.constant 0 : index
    %c0_0 = arith.constant 0 : index
    %0 = vector.load %arg0[%c0, %c0_0] : memref<8x128xf32, #tpu.memory_space<vmem>>, vector<8x128xf32>
    %1 = arith.truncf %0 : vector<8x128xf32> to vector<8x128xbf16>
    %c0_1 = arith.constant 0 : index
    %c0_2 = arith.constant 0 : index
    %2 = vector.load %arg1[%c0_1, %c0_2] : memref<128x128xbf16, #tpu.memory_space<vmem>>, vector<128x128xbf16>
    %cst = arith.constant dense<0.000000e+00> : vector<8x128xf32>
    %3 = tpu.matmul %1, %2, %cst {dimension_numbers = #tpu.dot_dimension_numbers<[1], [0], [0], [1], [0, 0, 1, 1], [], []>} : vector<8x128xbf16>, vector<128x128xbf16>, vector<8x128xf32> -> vector<8x128xf32>
    %c0_3 = arith.constant 0 : index
    %c0_4 = arith.constant 0 : index
    %4 = vector.load %arg2[%c0_3, %c0_4] : memref<1x128xf32, #tpu.memory_space<vmem>>, vector<1x128xf32>
    %5 = vector.broadcast %4 : vector<1x128xf32> to vector<8x128xf32>
    %6 = arith.addf %3, %5 : vector<8x128xf32>
    %cst_5 = arith.constant 0.000000e+00 : f32
    %7 = vector.broadcast %cst_5 : f32 to vector<8x128xf32>
    %8 = arith.cmpf oge, %6, %7 : vector<8x128xf32>
    %cst_6 = arith.constant 2.000000e-01 : f32
    %9 = vector.broadcast %cst_6 : f32 to vector<8x128xf32>
    %10 = arith.mulf %9, %6 : vector<8x128xf32>
    %11 = arith.select %8, %6, %10 : vector<8x128xi1>, vector<8x128xf32>
    %12 = arith.truncf %11 : vector<8x128xf32> to vector<8x128xbf16>
    %c0_7 = arith.constant 0 : index
    %c0_8 = arith.constant 0 : index
    %13 = vector.load %arg3[%c0_7, %c0_8] : memref<128x128xbf16, #tpu.memory_space<vmem>>, vector<128x128xbf16>
    %cst_9 = arith.constant dense<0.000000e+00> : vector<8x128xf32>
    %14 = tpu.matmul %12, %13, %cst_9 {dimension_numbers = #tpu.dot_dimension_numbers<[1], [0], [0], [1], [0, 0, 1, 1], [], []>} : vector<8x128xbf16>, vector<128x128xbf16>, vector<8x128xf32> -> vector<8x128xf32>
    %c0_10 = arith.constant 0 : index
    %c0_11 = arith.constant 0 : index
    %15 = vector.load %arg4[%c0_10, %c0_11] : memref<1x128xf32, #tpu.memory_space<vmem>>, vector<1x128xf32>
    %16 = vector.broadcast %15 : vector<1x128xf32> to vector<8x128xf32>
    %17 = arith.addf %14, %16 : vector<8x128xf32>
    %cst_12 = arith.constant 0.000000e+00 : f32
    %18 = vector.broadcast %cst_12 : f32 to vector<8x128xf32>
    %19 = arith.cmpf oge, %17, %18 : vector<8x128xf32>
    %cst_13 = arith.constant 2.000000e-01 : f32
    %20 = vector.broadcast %cst_13 : f32 to vector<8x128xf32>
    %21 = arith.mulf %20, %17 : vector<8x128xf32>
    %22 = arith.select %19, %17, %21 : vector<8x128xi1>, vector<8x128xf32>
    %23 = arith.truncf %22 : vector<8x128xf32> to vector<8x128xbf16>
    %c0_14 = arith.constant 0 : index
    %c0_15 = arith.constant 0 : index
    %24 = vector.load %arg5[%c0_14, %c0_15] : memref<128x128xbf16, #tpu.memory_space<vmem>>, vector<128x128xbf16>
    %cst_16 = arith.constant dense<0.000000e+00> : vector<8x128xf32>
    %25 = tpu.matmul %23, %24, %cst_16 {dimension_numbers = #tpu.dot_dimension_numbers<[1], [0], [0], [1], [0, 0, 1, 1], [], []>} : vector<8x128xbf16>, vector<128x128xbf16>, vector<8x128xf32> -> vector<8x128xf32>
    %c0_17 = arith.constant 0 : index
    %c0_18 = arith.constant 0 : index
    %26 = vector.load %arg6[%c0_17, %c0_18] : memref<1x128xf32, #tpu.memory_space<vmem>>, vector<1x128xf32>
    %27 = vector.broadcast %26 : vector<1x128xf32> to vector<8x128xf32>
    %28 = arith.addf %25, %27 : vector<8x128xf32>
    %cst_19 = arith.constant 0.000000e+00 : f32
    %29 = vector.broadcast %cst_19 : f32 to vector<8x128xf32>
    %30 = arith.cmpf oge, %28, %29 : vector<8x128xf32>
    %cst_20 = arith.constant 2.000000e-01 : f32
    %31 = vector.broadcast %cst_20 : f32 to vector<8x128xf32>
    %32 = arith.mulf %31, %28 : vector<8x128xf32>
    %33 = arith.select %30, %28, %32 : vector<8x128xi1>, vector<8x128xf32>
    %34 = arith.truncf %33 : vector<8x128xf32> to vector<8x128xbf16>
    %c0_21 = arith.constant 0 : index
    %c0_22 = arith.constant 0 : index
    %35 = vector.load %arg7[%c0_21, %c0_22] : memref<128x128xbf16, #tpu.memory_space<vmem>>, vector<128x128xbf16>
    %cst_23 = arith.constant dense<0.000000e+00> : vector<8x128xf32>
    %36 = tpu.matmul %34, %35, %cst_23 {dimension_numbers = #tpu.dot_dimension_numbers<[1], [0], [0], [1], [0, 0, 1, 1], [], []>} : vector<8x128xbf16>, vector<128x128xbf16>, vector<8x128xf32> -> vector<8x128xf32>
    %c0_24 = arith.constant 0 : index
    %c0_25 = arith.constant 0 : index
    %37 = vector.load %arg8[%c0_24, %c0_25] : memref<1x128xf32, #tpu.memory_space<vmem>>, vector<1x128xf32>
    %38 = vector.broadcast %37 : vector<1x128xf32> to vector<8x128xf32>
    %39 = arith.addf %36, %38 : vector<8x128xf32>
    %cst_26 = arith.constant 0.000000e+00 : f32
    %40 = vector.broadcast %cst_26 : f32 to vector<8x128xf32>
    %41 = arith.cmpf oge, %39, %40 : vector<8x128xf32>
    %cst_27 = arith.constant 2.000000e-01 : f32
    %42 = vector.broadcast %cst_27 : f32 to vector<8x128xf32>
    %43 = arith.mulf %42, %39 : vector<8x128xf32>
    %44 = arith.select %41, %39, %43 : vector<8x128xi1>, vector<8x128xf32>
    %45 = arith.truncf %44 : vector<8x128xf32> to vector<8x128xbf16>
    %c0_28 = arith.constant 0 : index
    %c0_29 = arith.constant 0 : index
    %46 = vector.load %arg9[%c0_28, %c0_29] : memref<128x128xbf16, #tpu.memory_space<vmem>>, vector<128x128xbf16>
    %cst_30 = arith.constant dense<0.000000e+00> : vector<8x128xf32>
    %47 = tpu.matmul %45, %46, %cst_30 {dimension_numbers = #tpu.dot_dimension_numbers<[1], [0], [0], [1], [0, 0, 1, 1], [], []>} : vector<8x128xbf16>, vector<128x128xbf16>, vector<8x128xf32> -> vector<8x128xf32>
    %c0_31 = arith.constant 0 : index
    %c0_32 = arith.constant 0 : index
    %48 = vector.load %arg10[%c0_31, %c0_32] : memref<1x128xf32, #tpu.memory_space<vmem>>, vector<1x128xf32>
    %49 = vector.broadcast %48 : vector<1x128xf32> to vector<8x128xf32>
    %50 = arith.addf %47, %49 : vector<8x128xf32>
    %c0_33 = arith.constant 0 : index
    %c0_34 = arith.constant 0 : index
    %51 = vector.load %arg11[%c0_33, %c0_34] : memref<8x128xf32, #tpu.memory_space<vmem>>, vector<8x128xf32>
    tpu.vector_store %arg11[%c0_33, %c0_34], %50 {strides = array<i32>} : memref<8x128xf32, #tpu.memory_space<vmem>>, vector<8x128xf32>,
    return
  }
}

</mosaic_0001>

<llo_original>
// kernel: tpu_custom_call.1
$region0: #{tpu_custom_call.1}
  #allocation0 [shape = 'u32[]', space=smem, size = 0x4, offset = 0x4, fixed_abs, tag = 'smem constant byte address 0x4 - core index']
  #allocation1 [shape = 'u32[144,128]{1,0:T(1,128)}', space=vmem, size = 0x12000, scoped, tag = 'internal scratch']
  %s0 = inlined_call_operand.hbm [shape: f32[8,128], index: 0, kind: input, shape index: {}]
  %s1 = inlined_call_operand.hbm [shape: bf16[128,128], index: 1, kind: input, shape index: {}]
  %s2 = inlined_call_operand.vmem [shape: f32[1,128], index: 2, kind: input, shape index: {}]
  %s3 = inlined_call_operand.hbm [shape: bf16[128,128], index: 3, kind: input, shape index: {}]
  %s4 = inlined_call_operand.vmem [shape: f32[1,128], index: 4, kind: input, shape index: {}]
  %s5 = inlined_call_operand.hbm [shape: bf16[128,128], index: 5, kind: input, shape index: {}]
  %s6 = inlined_call_operand.vmem [shape: f32[1,128], index: 6, kind: input, shape index: {}]
  %s7 = inlined_call_operand.hbm [shape: bf16[128,128], index: 7, kind: input, shape index: {}]
  %s8 = inlined_call_operand.vmem [shape: f32[1,128], index: 8, kind: input, shape index: {}]
  %s9 = inlined_call_operand.hbm [shape: bf16[128,128], index: 9, kind: input, shape index: {}]
  %s10 = inlined_call_operand.vmem [shape: f32[1,128], index: 10, kind: input, shape index: {}]
  %s11 = inlined_call_operand.hbm [shape: f32[8,128], index: 11, kind: output, shape index: {}]
  %s12 = sld [smem:[#allocation0]]
  $region78: #{tpu_custom_call.1} parent=0
    _
  %s14 = ssub.s32 1, %s12
  %s15 = scalar_select 0, %s14, %s12
  $region1: #{tpu_custom_call.1} parent=0
    #allocation2 [shape = 'u8[4096]{0}', space=vmem, size = 0x1000, scoped, tag = 'input window, operand 0, single buffered']
    #allocation3 [shape = 's32[1]{0}', space=sflag, size = 0x4, scoped, tag = 'scoped memory for tpu_custom_call.1']
    #allocation4 [shape = 's32[1]{0}', space=sflag, size = 0x4, scoped, tag = 'scoped memory for tpu_custom_call.1']
    #allocation5 [shape = 'u8[32768]{0}', space=vmem, size = 0x8000, scoped, tag = 'input window, operand 1, single buffered']
    #allocation6 [shape = 's32[1]{0}', space=sflag, size = 0x4, scoped, tag = 'scoped memory for tpu_custom_call.1']
    #allocation7 [shape = 'u8[32768]{0}', space=vmem, size = 0x8000, scoped, tag = 'input window, operand 3, single buffered']
    #allocation8 [shape = 'u8[32768]{0}', space=vmem, size = 0x8000, scoped, tag = 'input window, operand 5, single buffered']
    #allocation9 [shape = 's32[1]{0}', space=sflag, size = 0x4, scoped, tag = 'scoped memory for tpu_custom_call.1']
    #allocation10 [shape = 'u8[32768]{0}', space=vmem, size = 0x8000, scoped, tag = 'input window, operand 7, single buffered']
    #allocation11 [shape = 'u8[32768]{0}', space=vmem, size = 0x8000, scoped, tag = 'input window, operand 9, single buffered']
    #allocation12 [shape = 's32[1]{0}', space=sflag, size = 0x4, scoped, tag = 'scoped memory for tpu_custom_call.1']
    #allocation13 [shape = 'u8[4096]{0}', space=vmem, size = 0x1000, scoped, tag = 'output window, operand 0, single buffered']
    %16 = vsyncpa [#allocation3], 0
    %17 = vsyncpa [#allocation6], 0
    %18 = vsyncpa [#allocation9], 0
    %19 = vsyncpa [#allocation12], 0
    %20 = vsyncpa [#allocation4], 0
    // Predicated region
    $region2: #{tpu_custom_call.1} parent=1 // pred_check
      _
    $region3: #{tpu_custom_call.1} parent=1 // pred_check_branch
      %22 = sbr.rel (0) target = $region5
    $region4: #{tpu_custom_call.1} parent=1 // pred_region
      %s24 = ssub.s32 128, 128
      %25 = vsyncadd [#allocation3], %s24
      %s27 = sshll.u32 [#allocation2], 4
      %s28 = int_to_ptr.vmem [resolvable:$true] %s27
      %30 = dma.hbm_to_vmem [thread:$0]  %s0, 128, %s28, [#allocation3]
    $region5: #{tpu_custom_call.1} parent=1 // pred_fallthru
      _
    // Predicated region
    $region6: #{tpu_custom_call.1} parent=1 // pred_check
      _
    $region7: #{tpu_custom_call.1} parent=1 // pred_check_branch
      %32 = sbr.rel (0) target = $region9
    $region8: #{tpu_custom_call.1} parent=1 // pred_region
      %s34 = ssub.s32 1024, 1024
      %35 = vsyncadd [#allocation6], %s34
      %s36 = sshll.u32 [#allocation5], 4
      %s37 = int_to_ptr.vmem [resolvable:$true] %s36
      %42 = dma.hbm_to_vmem [thread:$0]  %s1, 1024, %s37, [#allocation6], 64, 64, 4
    $region9: #{tpu_custom_call.1} parent=1 // pred_fallthru
      _
    // Predicated region
    $region10: #{tpu_custom_call.1} parent=1 // pred_check
      _
    $region11: #{tpu_custom_call.1} parent=1 // pred_check_branch
      %44 = sbr.rel (0) target = $region13
    $region12: #{tpu_custom_call.1} parent=1 // pred_region
      _
    $region13: #{tpu_custom_call.1} parent=1 // pred_fallthru
      _
    // Predicated region
    $region14: #{tpu_custom_call.1} parent=1 // pred_check
      _
    $region15: #{tpu_custom_call.1} parent=1 // pred_check_branch
      %46 = sbr.rel (0) target = $region17
    $region16: #{tpu_custom_call.1} parent=1 // pred_region
      %s48 = ssub.s32 1024, 1024
      %49 = vsyncadd [#allocation6], %s48
      %s50 = sshll.u32 [#allocation7], 4
      %s51 = int_to_ptr.vmem [resolvable:$true] %s50
      %56 = dma.hbm_to_vmem [thread:$0]  %s3, 1024, %s51, [#allocation6], 64, 64, 4
    $region17: #{tpu_custom_call.1} parent=1 // pred_fallthru
      _
    // Predicated region
    $region18: #{tpu_custom_call.1} parent=1 // pred_check
      _
    $region19: #{tpu_custom_call.1} parent=1 // pred_check_branch
      %58 = sbr.rel (0) target = $region21
    $region20: #{tpu_custom_call.1} parent=1 // pred_region
      _
    $region21: #{tpu_custom_call.1} parent=1 // pred_fallthru
      _
    // Predicated region
    $region22: #{tpu_custom_call.1} parent=1 // pred_check
      _
    $region23: #{tpu_custom_call.1} parent=1 // pred_check_branch
      %60 = sbr.rel (0) target = $region25
    $region24: #{tpu_custom_call.1} parent=1 // pred_region
      %s62 = ssub.s32 1024, 1024
      %63 = vsyncadd [#allocation9], %s62
      %s64 = sshll.u32 [#allocation8], 4
      %s65 = int_to_ptr.vmem [resolvable:$true] %s64
      %70 = dma.hbm_to_vmem [thread:$0]  %s5, 1024, %s65, [#allocation9], 64, 64, 4
    $region25: #{tpu_custom_call.1} parent=1 // pred_fallthru
      _
    // Predicated region
    $region26: #{tpu_custom_call.1} parent=1 // pred_check
      _
    $region27: #{tpu_custom_call.1} parent=1 // pred_check_branch
      %72 = sbr.rel (0) target = $region29
    $region28: #{tpu_custom_call.1} parent=1 // pred_region
      _
    $region29: #{tpu_custom_call.1} parent=1 // pred_fallthru
      _
    // Predicated region
    $region30: #{tpu_custom_call.1} parent=1 // pred_check
      _
    $region31: #{tpu_custom_call.1} parent=1 // pred_check_branch
      %74 = sbr.rel (0) target = $region33
    $region32: #{tpu_custom_call.1} parent=1 // pred_region
      %s76 = ssub.s32 1024, 1024
      %77 = vsyncadd [#allocation9], %s76
      %s78 = sshll.u32 [#allocation10], 4
      %s79 = int_to_ptr.vmem [resolvable:$true] %s78
      %84 = dma.hbm_to_vmem [thread:$0]  %s7, 1024, %s79, [#allocation9], 64, 64, 4
    $region33: #{tpu_custom_call.1} parent=1 // pred_fallthru
      _
    // Predicated region
    $region34: #{tpu_custom_call.1} parent=1 // pred_check
      _
    $region35: #{tpu_custom_call.1} parent=1 // pred_check_branch
      %86 = sbr.rel (0) target = $region37
    $region36: #{tpu_custom_call.1} parent=1 // pred_region
      _
    $region37: #{tpu_custom_call.1} parent=1 // pred_fallthru
      _
    // Predicated region
    $region38: #{tpu_custom_call.1} parent=1 // pred_check
      _
    $region39: #{tpu_custom_call.1} parent=1 // pred_check_branch
      %88 = sbr.rel (0) target = $region41
    $region40: #{tpu_custom_call.1} parent=1 // pred_region
      %s90 = ssub.s32 1024, 1024
      %91 = vsyncadd [#allocation12], %s90
      %s92 = sshll.u32 [#allocation11], 4
      %s93 = int_to_ptr.vmem [resolvable:$true] %s92
      %98 = dma.hbm_to_vmem [thread:$0]  %s9, 1024, %s93, [#allocation12], 64, 64, 4
    $region41: #{tpu_custom_call.1} parent=1 // pred_fallthru
      _
    // Predicated region
    $region42: #{tpu_custom_call.1} parent=1 // pred_check
      _
    $region43: #{tpu_custom_call.1} parent=1 // pred_check_branch
      %100 = sbr.rel (0) target = $region45
    $region44: #{tpu_custom_call.1} parent=1 // pred_region
      _
    $region45: #{tpu_custom_call.1} parent=1 // pred_fallthru
      _
    // Predicated region
    $region46: #{tpu_custom_call.1} parent=1 // pred_check
      _
    $region47: #{tpu_custom_call.1} parent=1 // pred_check_branch
      %102 = sbr.rel (0) target = $region49
    $region48: #{tpu_custom_call.1} parent=1 // pred_region
      %103 = dma.done [#allocation3], 128
    $region49: #{tpu_custom_call.1} parent=1 // pred_fallthru
      _
    // Predicated region
    $region50: #{tpu_custom_call.1} parent=1 // pred_check
      _
    $region51: #{tpu_custom_call.1} parent=1 // pred_check_branch
      %105 = sbr.rel (0) target = $region53
    $region52: #{tpu_custom_call.1} parent=1 // pred_region
      %106 = dma.done [#allocation6], 1024
    $region53: #{tpu_custom_call.1} parent=1 // pred_fallthru
      _
    // Predicated region
    $region54: #{tpu_custom_call.1} parent=1 // pred_check
      _
    $region55: #{tpu_custom_call.1} parent=1 // pred_check_branch
      %108 = sbr.rel (0) target = $region57
    $region56: #{tpu_custom_call.1} parent=1 // pred_region
      %109 = dma.done [#allocation6], 1024
    $region57: #{tpu_custom_call.1} parent=1 // pred_fallthru
      _
    // Predicated region
    $region58: #{tpu_custom_call.1} parent=1 // pred_check
      _
    $region59: #{tpu_custom_call.1} parent=1 // pred_check_branch
      %111 = sbr.rel (0) target = $region61
    $region60: #{tpu_custom_call.1} parent=1 // pred_region
      %112 = dma.done [#allocation9], 1024
    $region61: #{tpu_custom_call.1} parent=1 // pred_fallthru
      _
    // Predicated region
    $region62: #{tpu_custom_call.1} parent=1 // pred_check
      _
    $region63: #{tpu_custom_call.1} parent=1 // pred_check_branch
      %114 = sbr.rel (0) target = $region65
    $region64: #{tpu_custom_call.1} parent=1 // pred_region
      %115 = dma.done [#allocation9], 1024
    $region65: #{tpu_custom_call.1} parent=1 // pred_fallthru
      _
    // Predicated region
    $region66: #{tpu_custom_call.1} parent=1 // pred_check
      _
    $region67: #{tpu_custom_call.1} parent=1 // pred_check_branch
      %117 = sbr.rel (0) target = $region69
    $region68: #{tpu_custom_call.1} parent=1 // pred_region
      %118 = dma.done [#allocation12], 1024
    $region69: #{tpu_custom_call.1} parent=1 // pred_fallthru
      _
    %v120 = vld [vmem:[#allocation2] sm:$0xff]
    %v121 = vpack.c.bf16 %v120, %v120
    %v122 = vld [vmem:[#allocation5] sm:$0xf]
    %v123 = vld [vmem:[#allocation5 + $0x4] sm:$0xf]
    %v124 = vld [vmem:[#allocation5 + $0x8] sm:$0xf]
    %v125 = vld [vmem:[#allocation5 + $0xc] sm:$0xf]
    %v126 = vld [vmem:[#allocation5 + $0x10] sm:$0xf]
    %v127 = vld [vmem:[#allocation5 + $0x14] sm:$0xf]
    %v128 = vld [vmem:[#allocation5 + $0x18] sm:$0xf]
    %v129 = vld [vmem:[#allocation5 + $0x1c] sm:$0xf]
    %v130 = vld [vmem:[#allocation5 + $0x20] sm:$0xf]
    %v131 = vld [vmem:[#allocation5 + $0x24] sm:$0xf]
    %v132 = vld [vmem:[#allocation5 + $0x28] sm:$0xf]
    %v133 = vld [vmem:[#allocation5 + $0x2c] sm:$0xf]
    %v134 = vld [vmem:[#allocation5 + $0x30] sm:$0xf]
    %v135 = vld [vmem:[#allocation5 + $0x34] sm:$0xf]
    %v136 = vld [vmem:[#allocation5 + $0x38] sm:$0xf]
    %v137 = vld [vmem:[#allocation5 + $0x3c] sm:$0xf]
    %v138 = vld [vmem:[%s2] sm:$0x1]
    %v140 = vlaneseq
    %v141 = vshrl.u32 %v140, 7
    %v142 = vsub.s32 0, %v141
    %v143 = vrot.slane %v138, %v142
    %v161 = vunpack.c.l.b16 %v122
    %v162 = vunpack.c.l.b16 %v123
    %v163 = vunpack.c.l.b16 %v124
    %v164 = vunpack.c.l.b16 %v125
    %v165 = vunpack.c.l.b16 %v126
    %v166 = vunpack.c.l.b16 %v127
    %v167 = vunpack.c.l.b16 %v128
    %v168 = vunpack.c.l.b16 %v129
    %v169 = vunpack.c.l.b16 %v130
    %v170 = vunpack.c.l.b16 %v131
    %v171 = vunpack.c.l.b16 %v132
    %v172 = vunpack.c.l.b16 %v133
    %v173 = vunpack.c.l.b16 %v134
    %v174 = vunpack.c.l.b16 %v135
    %v175 = vunpack.c.l.b16 %v136
    %v176 = vunpack.c.l.b16 %v137
    %v177 = vpack.c.b16 %v162, %v161
    %v178 = vpack.c.b16 %v164, %v163
    %v179 = vpack.c.b16 %v166, %v165
    %v180 = vpack.c.b16 %v168, %v167
    %v181 = vpack.c.b16 %v170, %v169
    %v182 = vpack.c.b16 %v172, %v171
    %v183 = vpack.c.b16 %v174, %v173
    %v184 = vpack.c.b16 %v176, %v175
    %193 = vmatprep.subr.bf16.mxu0 0
    %194 = vmatpush1.bf16.msra.mxu0 %v177
    %195 = vmatprep.subr.bf16.mxu0 0
    %196 = vmatpush1.bf16.msra.mxu0 %v178
    %197 = vmatprep.subr.bf16.mxu0 0
    %198 = vmatpush1.bf16.msra.mxu0 %v179
    %199 = vmatprep.subr.bf16.mxu0 0
    %200 = vmatpush1.bf16.msra.mxu0 %v180
    %201 = vmatprep.subr.bf16.mxu0 0
    %202 = vmatpush1.bf16.msra.mxu0 %v181
    %203 = vmatprep.subr.bf16.mxu0 0
    %204 = vmatpush1.bf16.msra.mxu0 %v182
    %205 = vmatprep.subr.bf16.mxu0 0
    %206 = vmatpush1.bf16.msra.mxu0 %v183
    %207 = vmatprep.subr.bf16.mxu0 0
    %208 = vmatpush1.bf16.msra.mxu0 %v184
    %209 = vmatprep.subr.bf16.mxu0 0
    %210 = vmatpush1.bf16.msra.mxu0 0
    %211 = vmatprep.subr.bf16.mxu0 0
    %212 = vmatpush1.bf16.msra.mxu0 0
    %213 = vmatprep.subr.bf16.mxu0 0
    %214 = vmatpush1.bf16.msra.mxu0 0
    %215 = vmatprep.subr.bf16.mxu0 0
    %216 = vmatpush1.bf16.msra.mxu0 0
    %217 = vmatprep.subr.bf16.mxu0 0
    %218 = vmatpush1.bf16.msra.mxu0 0
    %219 = vmatprep.subr.bf16.mxu0 0
    %220 = vmatpush1.bf16.msra.mxu0 0
    %221 = vmatprep.subr.bf16.mxu0 0
    %222 = vmatpush1.bf16.msra.mxu0 0
    %223 = vmatprep.subr.bf16.mxu0 0
    %224 = vmatpush1.bf16.msra.mxu0 0
    %225 = vmatprep.mubr.bf16.mxu0 0
    %226 = vmatmul.mubr.bf16.gmra.mrb[0].mxu0 %v121
    %v227 = vpop.f32.mrb[0].mxu0
    %v228 = vadd.f32 %v143, %v227
    %v229 = vpop.f32.mrb[0].mxu0
    %v230 = vpop.f32.mrb[0].mxu0
    %v231 = vpop.f32.mrb[0].mxu0
    %232 = vdwg.mxu0
    %vm233 = vcmp.ge.f32.partialorder %v228, 0.0
    %v234 = vmul.f32 %v228, 0.2
    %v235 = vsel %vm233, %v228, %v234
    %v236 = vpack.c.bf16 %v235, %v235
    %v237 = vld [vmem:[#allocation7] sm:$0xf]
    %v238 = vld [vmem:[#allocation7 + $0x4] sm:$0xf]
    %v239 = vld [vmem:[#allocation7 + $0x8] sm:$0xf]
    %v240 = vld [vmem:[#allocation7 + $0xc] sm:$0xf]
    %v241 = vld [vmem:[#allocation7 + $0x10] sm:$0xf]
    %v242 = vld [vmem:[#allocation7 + $0x14] sm:$0xf]
    %v243 = vld [vmem:[#allocation7 + $0x18] sm:$0xf]
    %v244 = vld [vmem:[#allocation7 + $0x1c] sm:$0xf]
    %v245 = vld [vmem:[#allocation7 + $0x20] sm:$0xf]
    %v246 = vld [vmem:[#allocation7 + $0x24] sm:$0xf]
    %v247 = vld [vmem:[#allocation7 + $0x28] sm:$0xf]
    %v248 = vld [vmem:[#allocation7 + $0x2c] sm:$0xf]
    %v249 = vld [vmem:[#allocation7 + $0x30] sm:$0xf]
    %v250 = vld [vmem:[#allocation7 + $0x34] sm:$0xf]
    %v251 = vld [vmem:[#allocation7 + $0x38] sm:$0xf]
    %v252 = vld [vmem:[#allocation7 + $0x3c] sm:$0xf]
    %v253 = vld [vmem:[%s4] sm:$0x1]
    %v255 = vlaneseq
    %v256 = vshrl.u32 %v255, 7
    %v257 = vsub.s32 0, %v256
    %v258 = vrot.slane %v253, %v257
    %v276 = vunpack.c.l.b16 %v237
    %v277 = vunpack.c.l.b16 %v238
    %v278 = vunpack.c.l.b16 %v239
    %v279 = vunpack.c.l.b16 %v240
    %v280 = vunpack.c.l.b16 %v241
    %v281 = vunpack.c.l.b16 %v242
    %v282 = vunpack.c.l.b16 %v243
    %v283 = vunpack.c.l.b16 %v244
    %v284 = vunpack.c.l.b16 %v245
    %v285 = vunpack.c.l.b16 %v246
    %v286 = vunpack.c.l.b16 %v247
    %v287 = vunpack.c.l.b16 %v248
    %v288 = vunpack.c.l.b16 %v249
    %v289 = vunpack.c.l.b16 %v250
    %v290 = vunpack.c.l.b16 %v251
    %v291 = vunpack.c.l.b16 %v252
    %v292 = vpack.c.b16 %v277, %v276
    %v293 = vpack.c.b16 %v279, %v278
    %v294 = vpack.c.b16 %v281, %v280
    %v295 = vpack.c.b16 %v283, %v282
    %v296 = vpack.c.b16 %v285, %v284
    %v297 = vpack.c.b16 %v287, %v286
    %v298 = vpack.c.b16 %v289, %v288
    %v299 = vpack.c.b16 %v291, %v290
    %308 = vmatprep.subr.bf16.mxu0 0
    %309 = vmatpush1.bf16.msra.mxu0 %v292
    %310 = vmatprep.subr.bf16.mxu0 0
    %311 = vmatpush1.bf16.msra.mxu0 %v293
    %312 = vmatprep.subr.bf16.mxu0 0
    %313 = vmatpush1.bf16.msra.mxu0 %v294
    %314 = vmatprep.subr.bf16.mxu0 0
    %315 = vmatpush1.bf16.msra.mxu0 %v295
    %316 = vmatprep.subr.bf16.mxu0 0
    %317 = vmatpush1.bf16.msra.mxu0 %v296
    %318 = vmatprep.subr.bf16.mxu0 0
    %319 = vmatpush1.bf16.msra.mxu0 %v297
    %320 = vmatprep.subr.bf16.mxu0 0
    %321 = vmatpush1.bf16.msra.mxu0 %v298
    %322 = vmatprep.subr.bf16.mxu0 0
    %323 = vmatpush1.bf16.msra.mxu0 %v299
    %324 = vmatprep.subr.bf16.mxu0 0
    %325 = vmatpush1.bf16.msra.mxu0 0
    %326 = vmatprep.subr.bf16.mxu0 0
    %327 = vmatpush1.bf16.msra.mxu0 0
    %328 = vmatprep.subr.bf16.mxu0 0
    %329 = vmatpush1.bf16.msra.mxu0 0
    %330 = vmatprep.subr.bf16.mxu0 0
    %331 = vmatpush1.bf16.msra.mxu0 0
    %332 = vmatprep.subr.bf16.mxu0 0
    %333 = vmatpush1.bf16.msra.mxu0 0
    %334 = vmatprep.subr.bf16.mxu0 0
    %335 = vmatpush1.bf16.msra.mxu0 0
    %336 = vmatprep.subr.bf16.mxu0 0
    %337 = vmatpush1.bf16.msra.mxu0 0
    %338 = vmatprep.subr.bf16.mxu0 0
    %339 = vmatpush1.bf16.msra.mxu0 0
    %340 = vmatprep.mubr.bf16.mxu0 0
    %341 = vmatmul.mubr.bf16.gmra.mrb[0].mxu0 %v236
    %v342 = vpop.f32.mrb[0].mxu0
    %v343 = vadd.f32 %v258, %v342
    %v344 = vpop.f32.mrb[0].mxu0
    %v345 = vpop.f32.mrb[0].mxu0
    %v346 = vpop.f32.mrb[0].mxu0
    %347 = vdwg.mxu0
    %vm348 = vcmp.ge.f32.partialorder %v343, 0.0
    %v349 = vmul.f32 %v343, 0.2
    %v350 = vsel %vm348, %v343, %v349
    %v351 = vpack.c.bf16 %v350, %v350
    %v352 = vld [vmem:[#allocation8] sm:$0xf]
    %v353 = vld [vmem:[#allocation8 + $0x4] sm:$0xf]
    %v354 = vld [vmem:[#allocation8 + $0x8] sm:$0xf]
    %v355 = vld [vmem:[#allocation8 + $0xc] sm:$0xf]
    %v356 = vld [vmem:[#allocation8 + $0x10] sm:$0xf]
    %v357 = vld [vmem:[#allocation8 + $0x14] sm:$0xf]
    %v358 = vld [vmem:[#allocation8 + $0x18] sm:$0xf]
    %v359 = vld [vmem:[#allocation8 + $0x1c] sm:$0xf]
    %v360 = vld [vmem:[#allocation8 + $0x20] sm:$0xf]
    %v361 = vld [vmem:[#allocation8 + $0x24] sm:$0xf]
    %v362 = vld [vmem:[#allocation8 + $0x28] sm:$0xf]
    %v363 = vld [vmem:[#allocation8 + $0x2c] sm:$0xf]
    %v364 = vld [vmem:[#allocation8 + $0x30] sm:$0xf]
    %v365 = vld [vmem:[#allocation8 + $0x34] sm:$0xf]
    %v366 = vld [vmem:[#allocation8 + $0x38] sm:$0xf]
    %v367 = vld [vmem:[#allocation8 + $0x3c] sm:$0xf]
    %v368 = vld [vmem:[%s6] sm:$0x1]
    %v370 = vlaneseq
    %v371 = vshrl.u32 %v370, 7
    %v372 = vsub.s32 0, %v371
    %v373 = vrot.slane %v368, %v372
    %v391 = vunpack.c.l.b16 %v352
    %v392 = vunpack.c.l.b16 %v353
    %v393 = vunpack.c.l.b16 %v354
    %v394 = vunpack.c.l.b16 %v355
    %v395 = vunpack.c.l.b16 %v356
    %v396 = vunpack.c.l.b16 %v357
    %v397 = vunpack.c.l.b16 %v358
    %v398 = vunpack.c.l.b16 %v359
    %v399 = vunpack.c.l.b16 %v360
    %v400 = vunpack.c.l.b16 %v361
    %v401 = vunpack.c.l.b16 %v362
    %v402 = vunpack.c.l.b16 %v363
    %v403 = vunpack.c.l.b16 %v364
    %v404 = vunpack.c.l.b16 %v365
    %v405 = vunpack.c.l.b16 %v366
    %v406 = vunpack.c.l.b16 %v367
    %v407 = vpack.c.b16 %v392, %v391
    %v408 = vpack.c.b16 %v394, %v393
    %v409 = vpack.c.b16 %v396, %v395
    %v410 = vpack.c.b16 %v398, %v397
    %v411 = vpack.c.b16 %v400, %v399
    %v412 = vpack.c.b16 %v402, %v401
    %v413 = vpack.c.b16 %v404, %v403
    %v414 = vpack.c.b16 %v406, %v405
    %423 = vmatprep.subr.bf16.mxu0 0
    %424 = vmatpush1.bf16.msra.mxu0 %v407
    %425 = vmatprep.subr.bf16.mxu0 0
    %426 = vmatpush1.bf16.msra.mxu0 %v408
    %427 = vmatprep.subr.bf16.mxu0 0
    %428 = vmatpush1.bf16.msra.mxu0 %v409
    %429 = vmatprep.subr.bf16.mxu0 0
    %430 = vmatpush1.bf16.msra.mxu0 %v410
    %431 = vmatprep.subr.bf16.mxu0 0
    %432 = vmatpush1.bf16.msra.mxu0 %v411
    %433 = vmatprep.subr.bf16.mxu0 0
    %434 = vmatpush1.bf16.msra.mxu0 %v412
    %435 = vmatprep.subr.bf16.mxu0 0
    %436 = vmatpush1.bf16.msra.mxu0 %v413
    %437 = vmatprep.subr.bf16.mxu0 0
    %438 = vmatpush1.bf16.msra.mxu0 %v414
    %439 = vmatprep.subr.bf16.mxu0 0
    %440 = vmatpush1.bf16.msra.mxu0 0
    %441 = vmatprep.subr.bf16.mxu0 0
    %442 = vmatpush1.bf16.msra.mxu0 0
    %443 = vmatprep.subr.bf16.mxu0 0
    %444 = vmatpush1.bf16.msra.mxu0 0
    %445 = vmatprep.subr.bf16.mxu0 0
    %446 = vmatpush1.bf16.msra.mxu0 0
    %447 = vmatprep.subr.bf16.mxu0 0
    %448 = vmatpush1.bf16.msra.mxu0 0
    %449 = vmatprep.subr.bf16.mxu0 0
    %450 = vmatpush1.bf16.msra.mxu0 0
    %451 = vmatprep.subr.bf16.mxu0 0
    %452 = vmatpush1.bf16.msra.mxu0 0
    %453 = vmatprep.subr.bf16.mxu0 0
    %454 = vmatpush1.bf16.msra.mxu0 0
    %455 = vmatprep.mubr.bf16.mxu0 0
    %456 = vmatmul.mubr.bf16.gmra.mrb[0].mxu0 %v351
    %v457 = vpop.f32.mrb[0].mxu0
    %v458 = vadd.f32 %v373, %v457
    %v459 = vpop.f32.mrb[0].mxu0
    %v460 = vpop.f32.mrb[0].mxu0
    %v461 = vpop.f32.mrb[0].mxu0
    %462 = vdwg.mxu0
    %vm463 = vcmp.ge.f32.partialorder %v458, 0.0
    %v464 = vmul.f32 %v458, 0.2
    %v465 = vsel %vm463, %v458, %v464
    %v466 = vpack.c.bf16 %v465, %v465
    %v467 = vld [vmem:[#allocation10] sm:$0xf]
    %v468 = vld [vmem:[#allocation10 + $0x4] sm:$0xf]
    %v469 = vld [vmem:[#allocation10 + $0x8] sm:$0xf]
    %v470 = vld [vmem:[#allocation10 + $0xc] sm:$0xf]
    %v471 = vld [vmem:[#allocation10 + $0x10] sm:$0xf]
    %v472 = vld [vmem:[#allocation10 + $0x14] sm:$0xf]
    %v473 = vld [vmem:[#allocation10 + $0x18] sm:$0xf]
    %v474 = vld [vmem:[#allocation10 + $0x1c] sm:$0xf]
    %v475 = vld [vmem:[#allocation10 + $0x20] sm:$0xf]
    %v476 = vld [vmem:[#allocation10 + $0x24] sm:$0xf]
    %v477 = vld [vmem:[#allocation10 + $0x28] sm:$0xf]
    %v478 = vld [vmem:[#allocation10 + $0x2c] sm:$0xf]
    %v479 = vld [vmem:[#allocation10 + $0x30] sm:$0xf]
    %v480 = vld [vmem:[#allocation10 + $0x34] sm:$0xf]
    %v481 = vld [vmem:[#allocation10 + $0x38] sm:$0xf]
    %v482 = vld [vmem:[#allocation10 + $0x3c] sm:$0xf]
    %v483 = vld [vmem:[%s8] sm:$0x1]
    %v485 = vlaneseq
    %v486 = vshrl.u32 %v485, 7
    %v487 = vsub.s32 0, %v486
    %v488 = vrot.slane %v483, %v487
    %v506 = vunpack.c.l.b16 %v467
    %v507 = vunpack.c.l.b16 %v468
    %v508 = vunpack.c.l.b16 %v469
    %v509 = vunpack.c.l.b16 %v470
    %v510 = vunpack.c.l.b16 %v471
    %v511 = vunpack.c.l.b16 %v472
    %v512 = vunpack.c.l.b16 %v473
    %v513 = vunpack.c.l.b16 %v474
    %v514 = vunpack.c.l.b16 %v475
    %v515 = vunpack.c.l.b16 %v476
    %v516 = vunpack.c.l.b16 %v477
    %v517 = vunpack.c.l.b16 %v478
    %v518 = vunpack.c.l.b16 %v479
    %v519 = vunpack.c.l.b16 %v480
    %v520 = vunpack.c.l.b16 %v481
    %v521 = vunpack.c.l.b16 %v482
    %v522 = vpack.c.b16 %v507, %v506
    %v523 = vpack.c.b16 %v509, %v508
    %v524 = vpack.c.b16 %v511, %v510
    %v525 = vpack.c.b16 %v513, %v512
    %v526 = vpack.c.b16 %v515, %v514
    %v527 = vpack.c.b16 %v517, %v516
    %v528 = vpack.c.b16 %v519, %v518
    %v529 = vpack.c.b16 %v521, %v520
    %538 = vmatprep.subr.bf16.mxu0 0
    %539 = vmatpush1.bf16.msra.mxu0 %v522
    %540 = vmatprep.subr.bf16.mxu0 0
    %541 = vmatpush1.bf16.msra.mxu0 %v523
    %542 = vmatprep.subr.bf16.mxu0 0
    %543 = vmatpush1.bf16.msra.mxu0 %v524
    %544 = vmatprep.subr.bf16.mxu0 0
    %545 = vmatpush1.bf16.msra.mxu0 %v525
    %546 = vmatprep.subr.bf16.mxu0 0
    %547 = vmatpush1.bf16.msra.mxu0 %v526
    %548 = vmatprep.subr.bf16.mxu0 0
    %549 = vmatpush1.bf16.msra.mxu0 %v527
    %550 = vmatprep.subr.bf16.mxu0 0
    %551 = vmatpush1.bf16.msra.mxu0 %v528
    %552 = vmatprep.subr.bf16.mxu0 0
    %553 = vmatpush1.bf16.msra.mxu0 %v529
    %554 = vmatprep.subr.bf16.mxu0 0
    %555 = vmatpush1.bf16.msra.mxu0 0
    %556 = vmatprep.subr.bf16.mxu0 0
    %557 = vmatpush1.bf16.msra.mxu0 0
    %558 = vmatprep.subr.bf16.mxu0 0
    %559 = vmatpush1.bf16.msra.mxu0 0
    %560 = vmatprep.subr.bf16.mxu0 0
    %561 = vmatpush1.bf16.msra.mxu0 0
    %562 = vmatprep.subr.bf16.mxu0 0
    %563 = vmatpush1.bf16.msra.mxu0 0
    %564 = vmatprep.subr.bf16.mxu0 0
    %565 = vmatpush1.bf16.msra.mxu0 0
    %566 = vmatprep.subr.bf16.mxu0 0
    %567 = vmatpush1.bf16.msra.mxu0 0
    %568 = vmatprep.subr.bf16.mxu0 0
    %569 = vmatpush1.bf16.msra.mxu0 0
    %570 = vmatprep.mubr.bf16.mxu0 0
    %571 = vmatmul.mubr.bf16.gmra.mrb[0].mxu0 %v466
    %v572 = vpop.f32.mrb[0].mxu0
    %v573 = vadd.f32 %v488, %v572
    %v574 = vpop.f32.mrb[0].mxu0
    %v575 = vpop.f32.mrb[0].mxu0
    %v576 = vpop.f32.mrb[0].mxu0
    %577 = vdwg.mxu0
    %vm578 = vcmp.ge.f32.partialorder %v573, 0.0
    %v579 = vmul.f32 %v573, 0.2
    %v580 = vsel %vm578, %v573, %v579
    %v581 = vpack.c.bf16 %v580, %v580
    %v582 = vld [vmem:[#allocation11] sm:$0xf]
    %v583 = vld [vmem:[#allocation11 + $0x4] sm:$0xf]
    %v584 = vld [vmem:[#allocation11 + $0x8] sm:$0xf]
    %v585 = vld [vmem:[#allocation11 + $0xc] sm:$0xf]
    %v586 = vld [vmem:[#allocation11 + $0x10] sm:$0xf]
    %v587 = vld [vmem:[#allocation11 + $0x14] sm:$0xf]
    %v588 = vld [vmem:[#allocation11 + $0x18] sm:$0xf]
    %v589 = vld [vmem:[#allocation11 + $0x1c] sm:$0xf]
    %v590 = vld [vmem:[#allocation11 + $0x20] sm:$0xf]
    %v591 = vld [vmem:[#allocation11 + $0x24] sm:$0xf]
    %v592 = vld [vmem:[#allocation11 + $0x28] sm:$0xf]
    %v593 = vld [vmem:[#allocation11 + $0x2c] sm:$0xf]
    %v594 = vld [vmem:[#allocation11 + $0x30] sm:$0xf]
    %v595 = vld [vmem:[#allocation11 + $0x34] sm:$0xf]
    %v596 = vld [vmem:[#allocation11 + $0x38] sm:$0xf]
    %v597 = vld [vmem:[#allocation11 + $0x3c] sm:$0xf]
    %v598 = vld [vmem:[%s10] sm:$0x1]
    %v600 = vlaneseq
    %v601 = vshrl.u32 %v600, 7
    %v602 = vsub.s32 0, %v601
    %v603 = vrot.slane %v598, %v602
    %v621 = vunpack.c.l.b16 %v582
    %v622 = vunpack.c.l.b16 %v583
    %v623 = vunpack.c.l.b16 %v584
    %v624 = vunpack.c.l.b16 %v585
    %v625 = vunpack.c.l.b16 %v586
    %v626 = vunpack.c.l.b16 %v587
    %v627 = vunpack.c.l.b16 %v588
    %v628 = vunpack.c.l.b16 %v589
    %v629 = vunpack.c.l.b16 %v590
    %v630 = vunpack.c.l.b16 %v591
    %v631 = vunpack.c.l.b16 %v592
    %v632 = vunpack.c.l.b16 %v593
    %v633 = vunpack.c.l.b16 %v594
    %v634 = vunpack.c.l.b16 %v595
    %v635 = vunpack.c.l.b16 %v596
    %v636 = vunpack.c.l.b16 %v597
    %v637 = vpack.c.b16 %v622, %v621
    %v638 = vpack.c.b16 %v624, %v623
    %v639 = vpack.c.b16 %v626, %v625
    %v640 = vpack.c.b16 %v628, %v627
    %v641 = vpack.c.b16 %v630, %v629
    %v642 = vpack.c.b16 %v632, %v631
    %v643 = vpack.c.b16 %v634, %v633
    %v644 = vpack.c.b16 %v636, %v635
    %653 = vmatprep.subr.bf16.mxu0 0
    %654 = vmatpush1.bf16.msra.mxu0 %v637
    %655 = vmatprep.subr.bf16.mxu0 0
    %656 = vmatpush1.bf16.msra.mxu0 %v638
    %657 = vmatprep.subr.bf16.mxu0 0
    %658 = vmatpush1.bf16.msra.mxu0 %v639
    %659 = vmatprep.subr.bf16.mxu0 0
    %660 = vmatpush1.bf16.msra.mxu0 %v640
    %661 = vmatprep.subr.bf16.mxu0 0
    %662 = vmatpush1.bf16.msra.mxu0 %v641
    %663 = vmatprep.subr.bf16.mxu0 0
    %664 = vmatpush1.bf16.msra.mxu0 %v642
    %665 = vmatprep.subr.bf16.mxu0 0
    %666 = vmatpush1.bf16.msra.mxu0 %v643
    %667 = vmatprep.subr.bf16.mxu0 0
    %668 = vmatpush1.bf16.msra.mxu0 %v644
    %669 = vmatprep.subr.bf16.mxu0 0
    %670 = vmatpush1.bf16.msra.mxu0 0
    %671 = vmatprep.subr.bf16.mxu0 0
    %672 = vmatpush1.bf16.msra.mxu0 0
    %673 = vmatprep.subr.bf16.mxu0 0
    %674 = vmatpush1.bf16.msra.mxu0 0
    %675 = vmatprep.subr.bf16.mxu0 0
    %676 = vmatpush1.bf16.msra.mxu0 0
    %677 = vmatprep.subr.bf16.mxu0 0
    %678 = vmatpush1.bf16.msra.mxu0 0
    %679 = vmatprep.subr.bf16.mxu0 0
    %680 = vmatpush1.bf16.msra.mxu0 0
    %681 = vmatprep.subr.bf16.mxu0 0
    %682 = vmatpush1.bf16.msra.mxu0 0
    %683 = vmatprep.subr.bf16.mxu0 0
    %684 = vmatpush1.bf16.msra.mxu0 0
    %685 = vmatprep.mubr.bf16.mxu0 0
    %686 = vmatmul.mubr.bf16.gmra.mrb[0].mxu0 %v581
    %v687 = vpop.f32.mrb[0].mxu0
    %v688 = vadd.f32 %v603, %v687
    %v689 = vpop.f32.mrb[0].mxu0
    %v690 = vpop.f32.mrb[0].mxu0
    %v691 = vpop.f32.mrb[0].mxu0
    %692 = vdwg.mxu0
    %693 = vst [vmem:[#allocation13] sm:$0xff] %v688
    // Predicated region
    $region70: #{tpu_custom_call.1} parent=1 // pred_check
      _
    $region71: #{tpu_custom_call.1} parent=1 // pred_check_branch
      %695 = sbr.rel (0) target = $region73
    $region72: #{tpu_custom_call.1} parent=1 // pred_region
      %s697 = ssub.s32 128, 128
      %698 = vsyncadd [#allocation4], %s697
      %s700 = sshll.u32 [#allocation13], 4
      %s701 = int_to_ptr.vmem [resolvable:$true] %s700
      %703 = dma.vmem_to_hbm [thread:$0]  %s701, 128, %s11, [#allocation4]
    $region73: #{tpu_custom_call.1} parent=1 // pred_fallthru
      _
    // Predicated region
    $region74: #{tpu_custom_call.1} parent=1 // pred_check
      _
    $region75: #{tpu_custom_call.1} parent=1 // pred_check_branch
      %705 = sbr.rel (0) target = $region77
    $region76: #{tpu_custom_call.1} parent=1 // pred_region
      %706 = dma.done [#allocation4], 128
    $region77: #{tpu_custom_call.1} parent=1 // pred_fallthru
      _
    %707 = vsyncpa [#allocation3], 1
    %708 = vsyncpa [#allocation6], 1
    %709 = vsyncpa [#allocation9], 1
    %710 = vsyncpa [#allocation12], 1
    %711 = vsyncpa [#allocation4], 1

</llo_original>
